<compile_context>
chip_gen: v6e
topology: v6e:2x2x1
jax: 0.10.0
libtpu: 0.0.40
codegen_flags: <defaults>
</compile_context>

<pallas_src>
import jax
import jax.numpy as jnp
import numpy as np
from jax.experimental import pallas as pl
from jax.experimental.pallas import tpu as pltpu


def _concat_kernel(*refs):
    """refs = (*input_refs, out_ref).

    input_refs[i] : (L, C_i, T) block of input i
    out_ref       : (L, sum(C_i), T) block of the output

    Pure streaming copy; dtype casts are fused into the store.
    Channel offsets that are multiples of the sublane packing (8 for f32,
    16 for bf16) give unmasked stores; misaligned offsets still lower
    correctly (masked sublane stores), just slower.
    """
    *in_refs, o_ref = refs
    off = 0
    for x_ref in in_refs:
        c = x_ref.shape[1]
        o_ref[:, off:off + c, :] = x_ref[...].astype(o_ref.dtype)
        off += c


def _working_set_budget_bytes():
    """Generation-aware cap on the double-buffered VMEM working set."""
    try:
        kind = jax.devices()[0].device_kind.lower()
    except Exception:
        kind = ""
    if "v5 lite" in kind or "v5e" in kind or "v5lite" in kind:
        return 12 << 20   # v5e scoped-VMEM default is only 16 MiB
    return 24 << 20       # v6e (32 MiB scoped / 128 phys), v7x (32 / 64)


def _pick_blocks(lead, c_total, trail, itemsize, budget_bytes):
    """Pick (L, T): lead-block rows and a lane-dense trail tile.

    Double-buffered working set = 4 * L * c_total * T * itemsize must stay
    under budget_bytes while each grid step is as large as possible.
    cdiv-based grids let Pallas mask ragged edge blocks, so T / L need not
    divide trail / lead.
    """
    allowed = max(1, budget_bytes // 4)       # bytes of one output-sized block
    row_bytes = max(1, c_total * itemsize)

    if trail < 128:
        t = trail                              # block last dim == full array dim
    else:
        t_cap = max(128, (allowed // row_bytes) // 128 * 128)
        t = min((trail // 128) * 128, t_cap)   # lane-dense multiple of 128

    l_cap = max(1, allowed // max(1, c_total * t * itemsize))
    l = min(lead, l_cap)

    # Keep >= 2 grid steps on a parallel axis so v7x's 2 TensorCores both work.
    if pl.cdiv(lead, l) * pl.cdiv(trail, t) == 1 and lead > 1:
        l = (lead + 1) // 2
    return l, t


def concat(xs, dimension=1):
    """Pallas equivalent of torch.cat(xs, dim=dimension)."""
    xs = list(xs)
    assert len(xs) >= 1
    rank = xs[0].ndim
    d = dimension % rank
    dtype = jnp.result_type(*xs)

    base = xs[0].shape
    for x in xs:
        assert x.ndim == rank
        for ax in range(rank):
            if ax != d:
                assert x.shape[ax] == base[ax], "non-concat dims must match"

    c_total = sum(int(x.shape[d]) for x in xs)
    out_shape = tuple(base[:d]) + (c_total,) + tuple(base[d + 1:])

    # Zero-width inputs (allowed by torch.cat) contribute nothing; drop them.
    xs = [x for x in xs if int(x.shape[d]) != 0]

    lead = int(np.prod(base[:d], dtype=np.int64))
    trail = int(np.prod(base[d + 1:], dtype=np.int64))

    if lead == 0 or trail == 0 or c_total == 0 or not xs:
        return jnp.zeros(out_shape, dtype)

    cs = [int(x.shape[d]) for x in xs]
    # Canonical 3-D views (lead, C_i, trail): pure reshapes, no transposes.
    xs3 = [x.reshape(lead, c, trail) for x, c in zip(xs, cs)]

    itemsize = jnp.dtype(dtype).itemsize
    budget = _working_set_budget_bytes()
    L, T = _pick_blocks(lead, c_total, trail, itemsize, budget)
    grid = (pl.cdiv(lead, L), pl.cdiv(trail, T))

    working_set = 4 * L * c_total * T * itemsize
    vmem_limit = int(min(max(budget, working_set) + (8 << 20), 48 << 20))

    in_specs = [pl.BlockSpec((L, c, T), lambda l, t: (l, 0, t)) for c in cs]
    out_spec = pl.BlockSpec((L, c_total, T), lambda l, t: (l, 0, t))

    out3 = pl.pallas_call(
        _concat_kernel,
        out_shape=jax.ShapeDtypeStruct((lead, c_total, trail), dtype),
        grid_spec=pltpu.PrefetchScalarGridSpec(
            num_scalar_prefetch=0,
            grid=grid,
            in_specs=in_specs,
            out_specs=out_spec,
        ),
        compiler_params=pltpu.CompilerParams(
            dimension_semantics=("parallel", "parallel"),
            vmem_limit_bytes=vmem_limit),
    )(*xs3)

    return out3.reshape(out_shape)


if __name__ == "__main__":
    key = jax.random.PRNGKey(0)
    k1, k2 = jax.random.split(key)

    # Typical use of Concat: merge two NCHW feature maps along the channel dim.
    x1 = jax.random.normal(k1, (2, 8, 16, 16), dtype=jnp.float32)
    x2 = jax.random.normal(k2, (2, 16, 16, 16), dtype=jnp.float32)

    out = jax.block_until_ready(concat([x1, x2], dimension=1))

    ref = jax.block_until_ready(jnp.concatenate([x1, x2], axis=1))
    np.testing.assert_array_equal(np.asarray(out), np.asarray(ref))
    assert out.shape == (2, 24, 16, 16)

    print("KERNEL_OK")
</pallas_src>

<mosaic_0001>
module attributes {stable_mosaic.version = 11 : i64} {
  func.func @_concat_kernel(%arg0: i32, %arg1: i32, %arg2: memref<1x8x256xf32, #tpu.memory_space<vmem>>, %arg3: memref<1x16x256xf32, #tpu.memory_space<vmem>>, %arg4: memref<1x24x256xf32, #tpu.memory_space<vmem>>) attributes {dimension_semantics = [#tpu.dimension_semantics<parallel>, #tpu.dimension_semantics<parallel>], iteration_bounds = array<i64: 2, 1>, scalar_prefetch = 0 : i64, scratch_operands = 0 : i64, tpu.core_type = #tpu.core_type<tc>, window_params = [{transform_indices = @transform_0, window_bounds = array<i64: 1, 8, 256>}, {transform_indices = @transform_1, window_bounds = array<i64: 1, 16, 256>}, {transform_indices = @transform_2, window_bounds = array<i64: 1, 24, 256>}]} {
    %c0 = arith.constant 0 : index
    %c0_0 = arith.constant 0 : index
    %c0_1 = arith.constant 0 : index
    %0 = vector.load %arg2[%c0, %c0_0, %c0_1] : memref<1x8x256xf32, #tpu.memory_space<vmem>>, vector<1x8x256xf32>
    %c0_2 = arith.constant 0 : index
    %c0_3 = arith.constant 0 : index
    %c0_4 = arith.constant 0 : index
    %1 = vector.load %arg4[%c0_2, %c0_3, %c0_4] : memref<1x24x256xf32, #tpu.memory_space<vmem>>, vector<1x8x256xf32>
    tpu.vector_store %arg4[%c0_2, %c0_3, %c0_4], %0 {strides = array<i32>} : memref<1x24x256xf32, #tpu.memory_space<vmem>>, vector<1x8x256xf32>,
    %c0_5 = arith.constant 0 : index
    %c0_6 = arith.constant 0 : index
    %c0_7 = arith.constant 0 : index
    %2 = vector.load %arg3[%c0_5, %c0_6, %c0_7] : memref<1x16x256xf32, #tpu.memory_space<vmem>>, vector<1x16x256xf32>
    %c0_8 = arith.constant 0 : index
    %c8 = arith.constant 8 : index
    %c0_9 = arith.constant 0 : index
    %3 = vector.load %arg4[%c0_8, %c8, %c0_9] : memref<1x24x256xf32, #tpu.memory_space<vmem>>, vector<1x16x256xf32>
    tpu.vector_store %arg4[%c0_8, %c8, %c0_9], %2 {strides = array<i32>} : memref<1x24x256xf32, #tpu.memory_space<vmem>>, vector<1x16x256xf32>,
    return
  }
  func.func @transform_0(%arg0: i32, %arg1: i32) -> (i32, i32, i32) {
    %c0_i32 = arith.constant 0 : i32
    %c0_i32_0 = arith.constant 0 : i32
    return %arg0, %c0_i32, %arg1 : i32, i32, i32
  }
  func.func @transform_1(%arg0: i32, %arg1: i32) -> (i32, i32, i32) {
    %c0_i32 = arith.constant 0 : i32
    %c0_i32_0 = arith.constant 0 : i32
    return %arg0, %c0_i32, %arg1 : i32, i32, i32
  }
  func.func @transform_2(%arg0: i32, %arg1: i32) -> (i32, i32, i32) {
    %c0_i32 = arith.constant 0 : i32
    %c0_i32_0 = arith.constant 0 : i32
    return %arg0, %c0_i32, %arg1 : i32, i32, i32
  }
}

</mosaic_0001>

<llo_original>
// kernel: tpu_custom_call.1
$region0: #{tpu_custom_call.1}
  #allocation0 [shape = 'u32[]', space=smem, size = 0x4, offset = 0x4, fixed_abs, tag = 'smem constant byte address 0x4 - core index']
  #allocation1 [shape = 'u32[144,128]{1,0:T(1,128)}', space=vmem, size = 0x12000, scoped, tag = 'internal scratch']
  %s0 = inlined_call_operand.hbm [shape: f32[2,8,256], index: 0, kind: input, shape index: {}]
  %s1 = inlined_call_operand.hbm [shape: f32[2,16,256], index: 1, kind: input, shape index: {}]
  %s2 = inlined_call_operand.hbm [shape: f32[2,24,256], index: 2, kind: output, shape index: {}]
  %s3 = sld [smem:[#allocation0]]
  $region49: #{tpu_custom_call.1} parent=0
    _
  %s5 = ssub.s32 1, %s3
  %s6 = scalar_select 0, %s5, %s3
  $region1: #{tpu_custom_call.1} parent=0
    #allocation2 [shape = 'u8[16384]{0}', space=vmem, size = 0x4000, scoped, tag = 'input window, operand 0']
    #allocation3 [shape = 's32[2]{0}', space=sflag, size = 0x8, scoped, tag = 'scoped memory for tpu_custom_call.1']
    #allocation4 [shape = 's32[2]{0}', space=sflag, size = 0x8, scoped, tag = 'scoped memory for tpu_custom_call.1']
    #allocation5 [shape = 'u8[32768]{0}', space=vmem, size = 0x8000, scoped, tag = 'input window, operand 1']
    #allocation6 [shape = 's32[2]{0}', space=sflag, size = 0x8, scoped, tag = 'scoped memory for tpu_custom_call.1']
    #allocation7 [shape = 'u8[49152]{0}', space=vmem, size = 0xc000, scoped, tag = 'output window, operand 0']
    %7 = vsyncpa [#allocation3], 0
    %s8 = scalar_lea.sflag [#allocation3], 1
    %9 = vsyncpa %s8, 0
    %10 = vsyncpa [#allocation6], 0
    %s11 = scalar_lea.sflag [#allocation6], 1
    %12 = vsyncpa %s11, 0
    %13 = vsyncpa [#allocation4], 0
    %s14 = scalar_lea.sflag [#allocation4], 1
    %15 = vsyncpa %s14, 0
    loop: start=0, step=1, limit=4
    $region2: #{tpu_custom_call.1} parent=1 // loop_pre_header
      _
    $region3: #{tpu_custom_call.1} parent=1 // loop_header
      %s17 = sphi 0, %s21
      %p18 = scmp.ge.s32.totalorder %s17, 4
      %s24 = sphi 0, %s36
      %s25 = sphi 0, %s32
      %s26 = sphi 0, %s24
      %s27 = sphi 0, %s25
      %s28 = sphi 0, %s26
      %s29 = sphi 0, %s27
      %s41 = sphi 0, %s43
      %s44 = sphi 0, %s41
      %s45 = sphi 0, %s44
      %s61 = sphi 0, %s45
      %s69 = sphi 0, %s71
      %s72 = sphi 0, %s69
      %s73 = sphi 0, %s72
      %s89 = sphi 0, %s73
      %s97 = sphi 0, %s99
      %s100 = sphi 0, %s97
      %s101 = sphi 0, %s100
      %s117 = sphi 0, %s101
    $region4: #{tpu_custom_call.1} parent=1 // loop_header_branch
      %20 = sbr.rel (%p18) target = $region8
    $region5: #{tpu_custom_call.1} parent=1 // loop_body
      %s22 = ssub.s32 %s17, 1
      %s23 = ssub.s32 %s17, 2
      %s30 = sadd.s32 1, %s25
      %p31 = scmp.ge.s32.totalorder %s30, 1
      %s32 = scalar_select %p31, 0, %s30
      %s33 = sadd.s32 1, %s24
      %s34 = scalar_select %p31, %s33, %s24
      %p35 = scmp.ge.s32.totalorder %s34, 2
      %s36 = scalar_select %p35, 0, %s34
      %s37 = ssub.s32 %s24, %s36
      %s38 = ssub.s32 %s25, %s32
      %s39 = sor.u32 %s37, %s38
      %p40 = scmp.eq.s32.totalorder %s39, 0
      %s42 = sadd.s32 %s41, 1
      %s43 = scalar_select %p40, %s41, %s42
      %p46 = pneg %p40
      %p47 = scmp.eq.s32.totalorder %s17, 1
      %p48 = por %p46, %p47
      %p49 = scmp.ne.s32.totalorder %s41, %s44
      %p50 = scmp.eq.s32.totalorder %s17, 0
      %p51 = por %p49, %p50
      %p52 = scmp.ne.s32.totalorder %s41, %s44
      %p53 = scmp.eq.s32.totalorder %s22, 1
      %p54 = por %p52, %p53
      %p55 = scmp.ne.s32.totalorder %s44, %s45
      %p56 = scmp.eq.s32.totalorder %s22, 0
      %p57 = por %p55, %p56
      %p58 = scmp.ne.s32.totalorder %s44, %s45
      %p59 = scmp.eq.s32.totalorder %s23, 1
      %p60 = por %p58, %p59
      %p62 = scmp.ne.s32.totalorder %s45, %s61
      %p63 = scmp.eq.s32.totalorder %s23, 0
      %p64 = por %p62, %p63
      %s65 = ssub.s32 %s24, %s36
      %s66 = ssub.s32 %s25, %s32
      %s67 = sor.u32 %s65, %s66
      %p68 = scmp.eq.s32.totalorder %s67, 0
      %s70 = sadd.s32 %s69, 1
      %s71 = scalar_select %p68, %s69, %s70
      %p74 = pneg %p68
      %p75 = scmp.eq.s32.totalorder %s17, 1
      %p76 = por %p74, %p75
      %p77 = scmp.ne.s32.totalorder %s69, %s72
      %p78 = scmp.eq.s32.totalorder %s17, 0
      %p79 = por %p77, %p78
      %p80 = scmp.ne.s32.totalorder %s69, %s72
      %p81 = scmp.eq.s32.totalorder %s22, 1
      %p82 = por %p80, %p81
      %p83 = scmp.ne.s32.totalorder %s72, %s73
      %p84 = scmp.eq.s32.totalorder %s22, 0
      %p85 = por %p83, %p84
      %p86 = scmp.ne.s32.totalorder %s72, %s73
      %p87 = scmp.eq.s32.totalorder %s23, 1
      %p88 = por %p86, %p87
      %p90 = scmp.ne.s32.totalorder %s73, %s89
      %p91 = scmp.eq.s32.totalorder %s23, 0
      %p92 = por %p90, %p91
      %s93 = ssub.s32 %s24, %s36
      %s94 = ssub.s32 %s25, %s32
      %s95 = sor.u32 %s93, %s94
      %p96 = scmp.eq.s32.totalorder %s95, 0
      %s98 = sadd.s32 %s97, 1
      %s99 = scalar_select %p96, %s97, %s98
      %p102 = pneg %p96
      %p103 = scmp.eq.s32.totalorder %s17, 1
      %p104 = por %p102, %p103
      %p105 = scmp.ne.s32.totalorder %s97, %s100
      %p106 = scmp.eq.s32.totalorder %s17, 0
      %p107 = por %p105, %p106
      %p108 = scmp.ne.s32.totalorder %s97, %s100
      %p109 = scmp.eq.s32.totalorder %s22, 1
      %p110 = por %p108, %p109
      %p111 = scmp.ne.s32.totalorder %s100, %s101
      %p112 = scmp.eq.s32.totalorder %s22, 0
      %p113 = por %p111, %p112
      %p114 = scmp.ne.s32.totalorder %s100, %s101
      %p115 = scmp.eq.s32.totalorder %s23, 1
      %p116 = por %p114, %p115
      %p118 = scmp.ne.s32.totalorder %s101, %s117
      %p119 = scmp.eq.s32.totalorder %s23, 0
      %p120 = por %p118, %p119
      %p121 = scmp.le.s32.totalorder 1, %s17
      %p122 = scmp.lt.s32.totalorder %s17, 3
      %p123 = pnand %p121, %p122
      %p124 = pneg %p123
      // Predicated region
      $region9: #{tpu_custom_call.1} parent=5 // pred_check
        _
      $region10: #{tpu_custom_call.1} parent=5 // pred_check_branch
        %126 = sbr.rel (%p123) target = $region12
      $region11: #{tpu_custom_call.1} parent=5 // pred_region
        %s127 = ssub.s32 %s17, 1
      $region12: #{tpu_custom_call.1} parent=5 // pred_fallthru
        _
      %p128 = scmp.lt.s32.totalorder %s17, 2
      // Predicated region
      $region13: #{tpu_custom_call.1} parent=5 // pred_check
        %p129 = pneg %p128
      $region14: #{tpu_custom_call.1} parent=5 // pred_check_branch
        %131 = sbr.rel (%p129) target = $region16
      $region15: #{tpu_custom_call.1} parent=5 // pred_region
        // Predicated region
        $region17: #{tpu_custom_call.1} parent=15 // pred_check
          %p132 = pneg %p51
        $region18: #{tpu_custom_call.1} parent=15 // pred_check_branch
          %134 = sbr.rel (%p132) target = $region20
        $region19: #{tpu_custom_call.1} parent=15 // pred_region
          %s135 = sand.u32 %s41, 1
          %s136 = scalar_lea.sflag [#allocation3], %s135
          %s137 = sand.u32 %s41, 1
          %s138 = smul.addr %s137, 16
          %s139 = scalar_lea.vmem [#allocation2], %s138
          %s140 = smul.u32 2, %s25
          %s142 = ssub.s32 256, 256
          %143 = vsyncadd %s136, %s142
          %s144 = smul.addr %s24, 2
          %s145 = sadd.s32 %s140, %s144
          %s146 = smul.addr %s145, 128
          %s147 = scalar_lea.hbm %s0, %s146
          %s149 = sshll.u32 %s139, 4
          %s150 = int_to_ptr.vmem [resolvable:$true] %s149
          %152 = dma.hbm_to_vmem [thread:$0]  %s147, 256, %s150, %s136
        $region20: #{tpu_custom_call.1} parent=15 // pred_fallthru
          _
        // Predicated region
        $region21: #{tpu_custom_call.1} parent=15 // pred_check
          %p153 = pneg %p79
        $region22: #{tpu_custom_call.1} parent=15 // pred_check_branch
          %155 = sbr.rel (%p153) target = $region24
        $region23: #{tpu_custom_call.1} parent=15 // pred_region
          %s156 = sand.u32 %s69, 1
          %s157 = scalar_lea.sflag [#allocation6], %s156
          %s158 = sand.u32 %s69, 1
          %s159 = smul.addr %s158, 32
          %s160 = scalar_lea.vmem [#allocation5], %s159
          %s161 = smul.u32 2, %s25
          %s163 = ssub.s32 512, 512
          %164 = vsyncadd %s157, %s163
          %s165 = smul.addr %s24, 4
          %s166 = sadd.s32 %s161, %s165
          %s167 = smul.addr %s166, 128
          %s168 = scalar_lea.hbm %s1, %s167
          %s169 = sshll.u32 %s160, 4
          %s170 = int_to_ptr.vmem [resolvable:$true] %s169
          %175 = dma.hbm_to_vmem [thread:$0]  %s168, 512, %s170, %s157, 256, 256, 16
        $region24: #{tpu_custom_call.1} parent=15 // pred_fallthru
          _
      $region16: #{tpu_custom_call.1} parent=5 // pred_fallthru
        _
      %p176 = scmp.le.s32.totalorder 1, %s17
      %p177 = scmp.lt.s32.totalorder %s17, 3
      %p178 = pnand %p176, %p177
      %p179 = pneg %p178
      // Predicated region
      $region25: #{tpu_custom_call.1} parent=5 // pred_check
        _
      $region26: #{tpu_custom_call.1} parent=5 // pred_check_branch
        %181 = sbr.rel (%p178) target = $region28
      $region27: #{tpu_custom_call.1} parent=5 // pred_region
        %s182 = ssub.s32 %s17, 1
        %s183 = sand.u32 %s44, 1
        %s184 = scalar_lea.sflag [#allocation3], %s183
        %s185 = sand.u32 %s44, 1
        %s186 = smul.addr %s185, 16
        %s187 = scalar_lea.vmem [#allocation2], %s186
        // Predicated region
        $region29: #{tpu_custom_call.1} parent=27 // pred_check
          %p188 = pneg %p57
        $region30: #{tpu_custom_call.1} parent=27 // pred_check_branch
          %190 = sbr.rel (%p188) target = $region32
        $region31: #{tpu_custom_call.1} parent=27 // pred_region
          %191 = dma.done %s184, 256
        $region32: #{tpu_custom_call.1} parent=27 // pred_fallthru
          _
        %s192 = sand.u32 %s72, 1
        %s193 = scalar_lea.sflag [#allocation6], %s192
        %s194 = sand.u32 %s72, 1
        %s195 = smul.addr %s194, 32
        %s196 = scalar_lea.vmem [#allocation5], %s195
        // Predicated region
        $region33: #{tpu_custom_call.1} parent=27 // pred_check
          %p197 = pneg %p85
        $region34: #{tpu_custom_call.1} parent=27 // pred_check_branch
          %199 = sbr.rel (%p197) target = $region36
        $region35: #{tpu_custom_call.1} parent=27 // pred_region
          %200 = dma.done %s193, 512
        $region36: #{tpu_custom_call.1} parent=27 // pred_fallthru
          _
        %s201 = sand.u32 %s44, 1
        %s202 = scalar_lea.sflag [#allocation3], %s201
        %s203 = sand.u32 %s44, 1
        %s204 = smul.addr %s203, 16
        %s205 = scalar_lea.vmem [#allocation2], %s204
        %p206 = pneg %p57
        %p207 = pneg %p54
        %s208 = sand.u32 %s72, 1
        %s209 = scalar_lea.sflag [#allocation6], %s208
        %s210 = sand.u32 %s72, 1
        %s211 = smul.addr %s210, 32
        %s212 = scalar_lea.vmem [#allocation5], %s211
        %p213 = pneg %p85
        %p214 = pneg %p82
        %p215 = pneg %p113
        %p216 = pneg %p110
        %s217 = sand.u32 %s100, 1
        %s218 = scalar_lea.sflag [#allocation4], %s217
        %s219 = sand.u32 %s100, 1
        %s220 = smul.addr %s219, 48
        %s221 = scalar_lea.vmem [#allocation7], %s220
        %s222 = smul.u32 2, %s27
        %s223 = smul.u32 2, %s27
        %s224 = smul.u32 2, %s27
        %v225 = vld [vmem:[%s187] sm:$0xff]
        %v226 = vld [vmem:[%s187 + $0x8] sm:$0xff]
        %227 = vst [vmem:[%s221] sm:$0xff] %v225
        %228 = vst [vmem:[%s221 + $0x8] sm:$0xff] %v226
        %v229 = vld [vmem:[%s196] sm:$0xff]
        %v230 = vld [vmem:[%s196 + $0x8] sm:$0xff]
        %v231 = vld [vmem:[%s196 + $0x10] sm:$0xff]
        %v232 = vld [vmem:[%s196 + $0x18] sm:$0xff]
        %233 = vst [vmem:[%s221 + $0x10] sm:$0xff] %v229
        %234 = vst [vmem:[%s221 + $0x18] sm:$0xff] %v230
        %235 = vst [vmem:[%s221 + $0x20] sm:$0xff] %v231
        %236 = vst [vmem:[%s221 + $0x28] sm:$0xff] %v232
        %s237 = sand.u32 %s100, 1
        %s238 = scalar_lea.sflag [#allocation4], %s237
        %s239 = sand.u32 %s100, 1
        %s240 = smul.addr %s239, 48
        %s241 = scalar_lea.vmem [#allocation7], %s240
        // Predicated region
        $region37: #{tpu_custom_call.1} parent=27 // pred_check
          %p242 = pneg %p110
        $region38: #{tpu_custom_call.1} parent=27 // pred_check_branch
          %244 = sbr.rel (%p242) target = $region40
        $region39: #{tpu_custom_call.1} parent=27 // pred_region
          %s245 = smul.u32 2, %s27
          %s247 = ssub.s32 768, 768
          %248 = vsyncadd %s238, %s247
          %s249 = smul.addr %s26, 6
          %s250 = sadd.s32 %s245, %s249
          %s251 = smul.addr %s250, 128
          %s252 = scalar_lea.hbm %s2, %s251
          %s253 = sshll.u32 %s241, 4
          %s254 = int_to_ptr.vmem [resolvable:$true] %s253
          %259 = dma.vmem_to_hbm [thread:$0]  %s254, 768, %s252, %s238, 256, 256, 16
        $region40: #{tpu_custom_call.1} parent=27 // pred_fallthru
          _
      $region28: #{tpu_custom_call.1} parent=5 // pred_fallthru
        _
      %p260 = scmp.le.s32.totalorder 2, %s17
      // Predicated region
      $region41: #{tpu_custom_call.1} parent=5 // pred_check
        %p261 = pneg %p260
      $region42: #{tpu_custom_call.1} parent=5 // pred_check_branch
        %263 = sbr.rel (%p261) target = $region44
      $region43: #{tpu_custom_call.1} parent=5 // pred_region
        %s264 = ssub.s32 %s17, 2
        // Predicated region
        $region45: #{tpu_custom_call.1} parent=43 // pred_check
          %p265 = pneg %p116
        $region46: #{tpu_custom_call.1} parent=43 // pred_check_branch
          %267 = sbr.rel (%p265) target = $region48
        $region47: #{tpu_custom_call.1} parent=43 // pred_region
          %s268 = sand.u32 %s101, 1
          %s269 = scalar_lea.sflag [#allocation4], %s268
          %s270 = sand.u32 %s101, 1
          %s271 = smul.addr %s270, 48
          %s272 = scalar_lea.vmem [#allocation7], %s271
          %273 = dma.done %s269, 768
        $region48: #{tpu_custom_call.1} parent=43 // pred_fallthru
          _
      $region44: #{tpu_custom_call.1} parent=5 // pred_fallthru
        _
    $region6: #{tpu_custom_call.1} parent=1 // loop_footer
      %s21 = sadd.s32 1, %s17
    $region7: #{tpu_custom_call.1} parent=1 // loop_footer_branch
      %16 = sbr.rel target = $region3
    $region8: #{tpu_custom_call.1} parent=1 // loop_exit
      _
    %274 = vsyncpa [#allocation3], 1
    %s275 = scalar_lea.sflag [#allocation3], 1
    %276 = vsyncpa %s275, 1
    %277 = vsyncpa [#allocation6], 1
    %s278 = scalar_lea.sflag [#allocation6], 1
    %279 = vsyncpa %s278, 1
    %280 = vsyncpa [#allocation4], 1
    %s281 = scalar_lea.sflag [#allocation4], 1
    %282 = vsyncpa %s281, 1

</llo_original>
